<compile_context>
chip_gen: v5e
topology: v5e:2x2
jax: 0.10.0
libtpu: 0.0.40
codegen_flags: <defaults>
</compile_context>

<pallas_src>
import jax
import jax.numpy as jnp
import numpy as np
from jax import lax
from jax.experimental import pallas as pl
from jax.experimental.pallas import tpu as pltpu

# Interior row offset inside the padded VMEM scratch.  16 keeps the bulk
# interior store aligned to bf16 sublane packing (16 rows per packed vreg).
_PAD = 16


def _scratch_rows(H):
    # Rows [_PAD-1, _PAD+H] are read; leave a little headroom (VMEM is tiny).
    return _PAD + H + 8


# ----------------------------------------------------------------------------
# Fused kernel: (conv3x3 + folded BN + ReLU) x 2 for one batch element
# ----------------------------------------------------------------------------
def double_conv_kernel(x_ref, a1_ref, s1_ref, b1_ref, a2_ref, s2_ref, b2_ref,
                       o_ref, xrow_ref, yrow_ref):
    # x_ref : (1, H, W*Cin)       f32   input rows, channels folded into lanes
    # a1_ref: (3, W*Cin, W*Cout)  bf16  banded weights, one matrix per dy tap
    # s1/b1 : (1, W*Cout)         f32   folded BN scale / bias (per lane)
    # a2_ref: (3, W*Cout, W*Cout) bf16
    # s2/b2 : (1, W*Cout)         f32
    # o_ref : (1, H, W*Cout)      f32   lane-dense output
    # xrow_ref: VMEM (ROWS, W*Cin)  bf16 scratch (zeroed vertical halo)
    # yrow_ref: VMEM (ROWS, W*Cout) bf16 scratch for the stage-1 activation
    H = o_ref.shape[1]
    lanes_out = o_ref.shape[2]

    # ---- stage 1: stage input into VMEM with zeroed vertical halo ----------
    xrow_ref[...] = jnp.zeros_like(xrow_ref)                   # halo rows <- 0
    xrow_ref[_PAD:_PAD + H, :] = x_ref[0].astype(xrow_ref.dtype)

    # 3 banded matmuls (one per vertical tap): bf16 operands, f32 accumulate.
    # The accumulator is only (H, W*Cout) f32 -> a few vregs, no scratch needed.
    acc = jnp.zeros((H, lanes_out), jnp.float32)
    for dy in range(3):
        acc += jnp.dot(xrow_ref[_PAD - 1 + dy:_PAD - 1 + dy + H, :],
                       a1_ref[dy], preferred_element_type=jnp.float32)
    y1 = jnp.maximum(acc * s1_ref[...] + b1_ref[...], 0.0)     # BN(eval)+ReLU

    # ---- stage 2: intermediate activation stays in VMEM (no HBM trip) ------
    yrow_ref[...] = jnp.zeros_like(yrow_ref)
    yrow_ref[_PAD:_PAD + H, :] = y1.astype(yrow_ref.dtype)

    acc2 = jnp.zeros((H, lanes_out), jnp.float32)
    for dy in range(3):
        acc2 += jnp.dot(yrow_ref[_PAD - 1 + dy:_PAD - 1 + dy + H, :],
                        a2_ref[dy], preferred_element_type=jnp.float32)
    y2 = jnp.maximum(acc2 * s2_ref[...] + b2_ref[...], 0.0)

    o_ref[0] = y2.astype(o_ref.dtype)                          # lane-dense store


# ----------------------------------------------------------------------------
# Wrappers
# ----------------------------------------------------------------------------
def double_conv_nhwc(x_nhwc, a1, s1, b1, a2, s2, b2):
    """Fused DoubleConv, NHWC in / NHWC out (preferred entry: no transposes)."""
    B, H, W, Cin = x_nhwc.shape
    Cout = s1.shape[1] // W
    rows = _scratch_rows(H)
    x_rows = x_nhwc.reshape(B, H, W * Cin)            # free row-major reshape

    out = pl.pallas_call(
        double_conv_kernel,
        out_shape=jax.ShapeDtypeStruct((B, H, W * Cout), x_nhwc.dtype),
        grid=(B,),
        in_specs=[
            pl.BlockSpec((1, H, W * Cin), lambda b: (b, 0, 0)),
            pl.BlockSpec((3, W * Cin, W * Cout), lambda b: (0, 0, 0)),
            pl.BlockSpec((1, W * Cout), lambda b: (0, 0)),
            pl.BlockSpec((1, W * Cout), lambda b: (0, 0)),
            pl.BlockSpec((3, W * Cout, W * Cout), lambda b: (0, 0, 0)),
            pl.BlockSpec((1, W * Cout), lambda b: (0, 0)),
            pl.BlockSpec((1, W * Cout), lambda b: (0, 0)),
        ],
        out_specs=pl.BlockSpec((1, H, W * Cout), lambda b: (b, 0, 0)),
        scratch_shapes=[
            pltpu.VMEM((rows, W * Cin), jnp.bfloat16),
            pltpu.VMEM((rows, W * Cout), jnp.bfloat16),
        ],
        compiler_params=pltpu.CompilerParams(
            dimension_semantics=("parallel",),
            vmem_limit_bytes=32 * 1024 * 1024),
    )(x_rows, a1, s1, b1, a2, s2, b2)

    return out.reshape(B, H, W, Cout)


@jax.jit
def double_conv_forward(x_nchw, a1, s1, b1, a2, s2, b2):
    """PyTorch-parity entry point: NCHW in / NCHW out.

    In a real network keep activations NHWC end-to-end (double_conv_nhwc) and
    drop these boundary transposes.
    """
    x = jnp.transpose(x_nchw, (0, 2, 3, 1))
    y = double_conv_nhwc(x, a1, s1, b1, a2, s2, b2)
    return jnp.transpose(y, (0, 3, 1, 2))


# ----------------------------------------------------------------------------
# Parameter construction & one-time preprocessing
# ----------------------------------------------------------------------------
def make_params(key, in_channels, out_channels):
    """Conv2d(3x3) + BatchNorm2d params (deterministic, PyTorch-like shapes)."""
    k1, k2 = jax.random.split(key)
    fan_in = in_channels * 9
    bound = 1.0 / np.sqrt(fan_in)
    w_oihw = jax.random.uniform(k1, (out_channels, in_channels, 3, 3),
                                jnp.float32, -bound, bound)
    w_hwio = jnp.transpose(w_oihw, (2, 3, 1, 0))
    b_conv = jax.random.uniform(k2, (out_channels,), jnp.float32, -bound, bound)
    c = jnp.arange(out_channels, dtype=jnp.float32)
    return dict(w_hwio=w_hwio, b_conv=b_conv,
                gamma=1.0 + 0.1 * c, beta=0.05 * c,
                running_mean=0.01 * c, running_var=1.0 + 0.02 * c, eps=1e-5)


def build_banded_weights(w_hwio, W):
    """(3,3,Cin,Cout) -> (3, W*Cin, W*Cout) block-banded matrices (bf16).

    A[dy][wi*Cin + ci, wo*Cout + co] = w[dy, dx, ci, co] with wi = wo + dx - 1.
    Out-of-range wi are left at zero, which implements horizontal 'same'
    zero-padding, so the kernel needs no lane-misaligned slicing.
    """
    KH, KW, Cin, Cout = w_hwio.shape
    A = jnp.zeros((KH, W * Cin, W * Cout), jnp.float32)
    for dx in range(KW):
        for wo in range(W):
            wi = wo + dx - 1
            if 0 <= wi < W:
                A = A.at[:, wi * Cin:(wi + 1) * Cin,
                         wo * Cout:(wo + 1) * Cout].set(w_hwio[:, dx])
    return A.astype(jnp.bfloat16)


def prepare_stage(p, W):
    """Fold conv bias + BN(eval) into per-lane scale/bias; build banded weights."""
    bn_scale = p["gamma"] / jnp.sqrt(p["running_var"] + p["eps"])
    scale = bn_scale
    bias = (p["b_conv"] - p["running_mean"]) * bn_scale + p["beta"]
    a = build_banded_weights(p["w_hwio"], W)
    s_lane = jnp.tile(scale, W).reshape(1, -1).astype(jnp.float32)
    b_lane = jnp.tile(bias, W).reshape(1, -1).astype(jnp.float32)
    return a, s_lane, b_lane


# ----------------------------------------------------------------------------
# Pure-JAX references for correctness
# ----------------------------------------------------------------------------
def _round_bf16(x):
    return x.astype(jnp.bfloat16).astype(jnp.float32)


def ref_stage(x_nhwc, p, mirror_bf16):
    w = p["w_hwio"]
    if mirror_bf16:                      # mirror the kernel's bf16 operands
        x_nhwc, w = _round_bf16(x_nhwc), _round_bf16(w)
    y = lax.conv_general_dilated(
        x_nhwc, w, window_strides=(1, 1), padding="SAME",
        dimension_numbers=("NHWC", "HWIO", "NHWC"),
        preferred_element_type=jnp.float32)
    y = y + p["b_conv"]
    y = (y - p["running_mean"]) / jnp.sqrt(p["running_var"] + p["eps"])
    y = y * p["gamma"] + p["beta"]
    return jnp.maximum(y, 0.0)


def ref_double_conv(x_nchw, p1, p2, mirror_bf16=False):
    x = jnp.transpose(x_nchw, (0, 2, 3, 1))
    y = ref_stage(x, p1, mirror_bf16)
    y = ref_stage(y, p2, mirror_bf16)    # mirror also rounds the intermediate
    return jnp.transpose(y, (0, 3, 1, 2))


if __name__ == "__main__":
    key = jax.random.PRNGKey(0)
    kx, k1, k2 = jax.random.split(key, 3)

    B, Cin, Cout, H, W = 2, 4, 8, 16, 16
    x = jax.random.normal(kx, (B, Cin, H, W), jnp.float32)

    p1 = make_params(k1, Cin, Cout)
    p2 = make_params(k2, Cout, Cout)
    a1, s1, b1 = prepare_stage(p1, W)
    a2, s2, b2 = prepare_stage(p2, W)

    out = jax.block_until_ready(double_conv_forward(x, a1, s1, b1, a2, s2, b2))

    # Check 1: reference mirroring the kernel's bf16-operand / f32-accumulate
    # numerics (remaining differences: accumulation order only).
    ref_b = jax.block_until_ready(ref_double_conv(x, p1, p2, mirror_bf16=True))
    np.testing.assert_allclose(np.asarray(out), np.asarray(ref_b),
                               rtol=2e-3, atol=2e-3)

    # Check 2: exact f32 eval-mode PyTorch semantics (looser tolerance covers
    # the bf16 rounding of the matmul operands / VMEM intermediate).
    ref_f = jax.block_until_ready(ref_double_conv(x, p1, p2, mirror_bf16=False))
    np.testing.assert_allclose(np.asarray(out), np.asarray(ref_f),
                               rtol=2e-2, atol=2e-2)

    print("KERNEL_OK")
</pallas_src>

<mosaic_0001>
module attributes {stable_mosaic.version = 11 : i64} {
  func.func @double_conv_kernel(%arg0: i32, %arg1: memref<1x16x64xf32, #tpu.memory_space<vmem>>, %arg2: memref<3x64x128xbf16, #tpu.memory_space<vmem>>, %arg3: memref<1x128xf32, #tpu.memory_space<vmem>>, %arg4: memref<1x128xf32, #tpu.memory_space<vmem>>, %arg5: memref<3x128x128xbf16, #tpu.memory_space<vmem>>, %arg6: memref<1x128xf32, #tpu.memory_space<vmem>>, %arg7: memref<1x128xf32, #tpu.memory_space<vmem>>, %arg8: memref<1x16x128xf32, #tpu.memory_space<vmem>>, %arg9: memref<40x64xbf16, #tpu.memory_space<vmem>>, %arg10: memref<40x128xbf16, #tpu.memory_space<vmem>>) attributes {dimension_semantics = [#tpu.dimension_semantics<parallel>], iteration_bounds = array<i64: 2>, scalar_prefetch = 0 : i64, scratch_operands = 2 : i64, tpu.core_type = #tpu.core_type<tc>, window_params = [{transform_indices = @transform_0, window_bounds = array<i64: 1, 16, 64>}, {pipeline_mode = #tpu.pipeline_mode<synchronous>, transform_indices = @transform_1, window_bounds = array<i64: 3, 64, 128>}, {pipeline_mode = #tpu.pipeline_mode<synchronous>, transform_indices = @transform_2, window_bounds = array<i64: 1, 128>}, {pipeline_mode = #tpu.pipeline_mode<synchronous>, transform_indices = @transform_3, window_bounds = array<i64: 1, 128>}, {pipeline_mode = #tpu.pipeline_mode<synchronous>, transform_indices = @transform_4, window_bounds = array<i64: 3, 128, 128>}, {pipeline_mode = #tpu.pipeline_mode<synchronous>, transform_indices = @transform_5, window_bounds = array<i64: 1, 128>}, {pipeline_mode = #tpu.pipeline_mode<synchronous>, transform_indices = @transform_6, window_bounds = array<i64: 1, 128>}, {transform_indices = @transform_7, window_bounds = array<i64: 1, 16, 128>}]} {
    %cst = arith.constant 0.000000e+00 : bf16
    %0 = vector.broadcast %cst : bf16 to vector<40x64xbf16>
    %c0 = arith.constant 0 : index
    %c0_0 = arith.constant 0 : index
    %1 = vector.load %arg9[%c0, %c0_0] : memref<40x64xbf16, #tpu.memory_space<vmem>>, vector<40x64xbf16>
    tpu.vector_store %arg9[%c0, %c0_0], %0 {strides = array<i32>} : memref<40x64xbf16, #tpu.memory_space<vmem>>, vector<40x64xbf16>,
    %c0_1 = arith.constant 0 : index
    %c0_2 = arith.constant 0 : index
    %c0_3 = arith.constant 0 : index
    %2 = vector.load %arg1[%c0_1, %c0_2, %c0_3] : memref<1x16x64xf32, #tpu.memory_space<vmem>>, vector<1x16x64xf32>
    %3 = vector.shape_cast %2 : vector<1x16x64xf32> to vector<16x64xf32>
    %4 = arith.truncf %3 : vector<16x64xf32> to vector<16x64xbf16>
    %c16 = arith.constant 16 : index
    %c0_4 = arith.constant 0 : index
    %5 = vector.load %arg9[%c16, %c0_4] : memref<40x64xbf16, #tpu.memory_space<vmem>>, vector<16x64xbf16>
    tpu.vector_store %arg9[%c16, %c0_4], %4 {strides = array<i32>} : memref<40x64xbf16, #tpu.memory_space<vmem>>, vector<16x64xbf16>,
    %cst_5 = arith.constant 0.000000e+00 : f32
    %6 = vector.broadcast %cst_5 : f32 to vector<16x128xf32>
    %c15 = arith.constant 15 : index
    %c0_6 = arith.constant 0 : index
    %7 = vector.load %arg9[%c15, %c0_6] : memref<40x64xbf16, #tpu.memory_space<vmem>>, vector<16x64xbf16>
    %c0_7 = arith.constant 0 : index
    %c0_8 = arith.constant 0 : index
    %c0_9 = arith.constant 0 : index
    %8 = vector.load %arg2[%c0_7, %c0_8, %c0_9] : memref<3x64x128xbf16, #tpu.memory_space<vmem>>, vector<1x64x128xbf16>
    %9 = vector.shape_cast %8 : vector<1x64x128xbf16> to vector<64x128xbf16>
    %cst_10 = arith.constant dense<0.000000e+00> : vector<16x128xf32>
    %10 = tpu.matmul %7, %9, %cst_10 {dimension_numbers = #tpu.dot_dimension_numbers<[1], [0], [0], [1], [0, 0, 1, 1], [], []>} : vector<16x64xbf16>, vector<64x128xbf16>, vector<16x128xf32> -> vector<16x128xf32>
    %11 = arith.addf %6, %10 : vector<16x128xf32>
    %c16_11 = arith.constant 16 : index
    %c0_12 = arith.constant 0 : index
    %12 = vector.load %arg9[%c16_11, %c0_12] : memref<40x64xbf16, #tpu.memory_space<vmem>>, vector<16x64xbf16>
    %c1 = arith.constant 1 : index
    %c0_13 = arith.constant 0 : index
    %c0_14 = arith.constant 0 : index
    %13 = vector.load %arg2[%c1, %c0_13, %c0_14] : memref<3x64x128xbf16, #tpu.memory_space<vmem>>, vector<1x64x128xbf16>
    %14 = vector.shape_cast %13 : vector<1x64x128xbf16> to vector<64x128xbf16>
    %cst_15 = arith.constant dense<0.000000e+00> : vector<16x128xf32>
    %15 = tpu.matmul %12, %14, %cst_15 {dimension_numbers = #tpu.dot_dimension_numbers<[1], [0], [0], [1], [0, 0, 1, 1], [], []>} : vector<16x64xbf16>, vector<64x128xbf16>, vector<16x128xf32> -> vector<16x128xf32>
    %16 = arith.addf %11, %15 : vector<16x128xf32>
    %c17 = arith.constant 17 : index
    %c0_16 = arith.constant 0 : index
    %17 = vector.load %arg9[%c17, %c0_16] : memref<40x64xbf16, #tpu.memory_space<vmem>>, vector<16x64xbf16>
    %c2 = arith.constant 2 : index
    %c0_17 = arith.constant 0 : index
    %c0_18 = arith.constant 0 : index
    %18 = vector.load %arg2[%c2, %c0_17, %c0_18] : memref<3x64x128xbf16, #tpu.memory_space<vmem>>, vector<1x64x128xbf16>
    %19 = vector.shape_cast %18 : vector<1x64x128xbf16> to vector<64x128xbf16>
    %cst_19 = arith.constant dense<0.000000e+00> : vector<16x128xf32>
    %20 = tpu.matmul %17, %19, %cst_19 {dimension_numbers = #tpu.dot_dimension_numbers<[1], [0], [0], [1], [0, 0, 1, 1], [], []>} : vector<16x64xbf16>, vector<64x128xbf16>, vector<16x128xf32> -> vector<16x128xf32>
    %21 = arith.addf %16, %20 : vector<16x128xf32>
    %c0_20 = arith.constant 0 : index
    %c0_21 = arith.constant 0 : index
    %22 = vector.load %arg3[%c0_20, %c0_21] : memref<1x128xf32, #tpu.memory_space<vmem>>, vector<1x128xf32>
    %23 = vector.broadcast %22 : vector<1x128xf32> to vector<16x128xf32>
    %24 = arith.mulf %21, %23 : vector<16x128xf32>
    %c0_22 = arith.constant 0 : index
    %c0_23 = arith.constant 0 : index
    %25 = vector.load %arg4[%c0_22, %c0_23] : memref<1x128xf32, #tpu.memory_space<vmem>>, vector<1x128xf32>
    %26 = vector.broadcast %25 : vector<1x128xf32> to vector<16x128xf32>
    %27 = arith.addf %24, %26 : vector<16x128xf32>
    %cst_24 = arith.constant 0.000000e+00 : f32
    %28 = vector.broadcast %cst_24 : f32 to vector<16x128xf32>
    %29 = arith.maximumf %27, %28 : vector<16x128xf32>
    %cst_25 = arith.constant 0.000000e+00 : bf16
    %30 = vector.broadcast %cst_25 : bf16 to vector<40x128xbf16>
    %c0_26 = arith.constant 0 : index
    %c0_27 = arith.constant 0 : index
    %31 = vector.load %arg10[%c0_26, %c0_27] : memref<40x128xbf16, #tpu.memory_space<vmem>>, vector<40x128xbf16>
    tpu.vector_store %arg10[%c0_26, %c0_27], %30 {strides = array<i32>} : memref<40x128xbf16, #tpu.memory_space<vmem>>, vector<40x128xbf16>,
    %32 = arith.truncf %29 : vector<16x128xf32> to vector<16x128xbf16>
    %c16_28 = arith.constant 16 : index
    %c0_29 = arith.constant 0 : index
    %33 = vector.load %arg10[%c16_28, %c0_29] : memref<40x128xbf16, #tpu.memory_space<vmem>>, vector<16x128xbf16>
    tpu.vector_store %arg10[%c16_28, %c0_29], %32 {strides = array<i32>} : memref<40x128xbf16, #tpu.memory_space<vmem>>, vector<16x128xbf16>,
    %cst_30 = arith.constant 0.000000e+00 : f32
    %34 = vector.broadcast %cst_30 : f32 to vector<16x128xf32>
    %c15_31 = arith.constant 15 : index
    %c0_32 = arith.constant 0 : index
    %35 = vector.load %arg10[%c15_31, %c0_32] : memref<40x128xbf16, #tpu.memory_space<vmem>>, vector<16x128xbf16>
    %c0_33 = arith.constant 0 : index
    %c0_34 = arith.constant 0 : index
    %c0_35 = arith.constant 0 : index
    %36 = vector.load %arg5[%c0_33, %c0_34, %c0_35] : memref<3x128x128xbf16, #tpu.memory_space<vmem>>, vector<1x128x128xbf16>
    %37 = vector.shape_cast %36 : vector<1x128x128xbf16> to vector<128x128xbf16>
    %cst_36 = arith.constant dense<0.000000e+00> : vector<16x128xf32>
    %38 = tpu.matmul %35, %37, %cst_36 {dimension_numbers = #tpu.dot_dimension_numbers<[1], [0], [0], [1], [0, 0, 1, 1], [], []>} : vector<16x128xbf16>, vector<128x128xbf16>, vector<16x128xf32> -> vector<16x128xf32>
    %39 = arith.addf %34, %38 : vector<16x128xf32>
    %c16_37 = arith.constant 16 : index
    %c0_38 = arith.constant 0 : index
    %40 = vector.load %arg10[%c16_37, %c0_38] : memref<40x128xbf16, #tpu.memory_space<vmem>>, vector<16x128xbf16>
    %c1_39 = arith.constant 1 : index
    %c0_40 = arith.constant 0 : index
    %c0_41 = arith.constant 0 : index
    %41 = vector.load %arg5[%c1_39, %c0_40, %c0_41] : memref<3x128x128xbf16, #tpu.memory_space<vmem>>, vector<1x128x128xbf16>
    %42 = vector.shape_cast %41 : vector<1x128x128xbf16> to vector<128x128xbf16>
    %cst_42 = arith.constant dense<0.000000e+00> : vector<16x128xf32>
    %43 = tpu.matmul %40, %42, %cst_42 {dimension_numbers = #tpu.dot_dimension_numbers<[1], [0], [0], [1], [0, 0, 1, 1], [], []>} : vector<16x128xbf16>, vector<128x128xbf16>, vector<16x128xf32> -> vector<16x128xf32>
    %44 = arith.addf %39, %43 : vector<16x128xf32>
    %c17_43 = arith.constant 17 : index
    %c0_44 = arith.constant 0 : index
    %45 = vector.load %arg10[%c17_43, %c0_44] : memref<40x128xbf16, #tpu.memory_space<vmem>>, vector<16x128xbf16>
    %c2_45 = arith.constant 2 : index
    %c0_46 = arith.constant 0 : index
    %c0_47 = arith.constant 0 : index
    %46 = vector.load %arg5[%c2_45, %c0_46, %c0_47] : memref<3x128x128xbf16, #tpu.memory_space<vmem>>, vector<1x128x128xbf16>
    %47 = vector.shape_cast %46 : vector<1x128x128xbf16> to vector<128x128xbf16>
    %cst_48 = arith.constant dense<0.000000e+00> : vector<16x128xf32>
    %48 = tpu.matmul %45, %47, %cst_48 {dimension_numbers = #tpu.dot_dimension_numbers<[1], [0], [0], [1], [0, 0, 1, 1], [], []>} : vector<16x128xbf16>, vector<128x128xbf16>, vector<16x128xf32> -> vector<16x128xf32>
    %49 = arith.addf %44, %48 : vector<16x128xf32>
    %c0_49 = arith.constant 0 : index
    %c0_50 = arith.constant 0 : index
    %50 = vector.load %arg6[%c0_49, %c0_50] : memref<1x128xf32, #tpu.memory_space<vmem>>, vector<1x128xf32>
    %51 = vector.broadcast %50 : vector<1x128xf32> to vector<16x128xf32>
    %52 = arith.mulf %49, %51 : vector<16x128xf32>
    %c0_51 = arith.constant 0 : index
    %c0_52 = arith.constant 0 : index
    %53 = vector.load %arg7[%c0_51, %c0_52] : memref<1x128xf32, #tpu.memory_space<vmem>>, vector<1x128xf32>
    %54 = vector.broadcast %53 : vector<1x128xf32> to vector<16x128xf32>
    %55 = arith.addf %52, %54 : vector<16x128xf32>
    %cst_53 = arith.constant 0.000000e+00 : f32
    %56 = vector.broadcast %cst_53 : f32 to vector<16x128xf32>
    %57 = arith.maximumf %55, %56 : vector<16x128xf32>
    %c0_54 = arith.constant 0 : index
    %c0_55 = arith.constant 0 : index
    %c0_56 = arith.constant 0 : index
    %58 = vector.load %arg8[%c0_54, %c0_55, %c0_56] : memref<1x16x128xf32, #tpu.memory_space<vmem>>, vector<1x16x128xf32>
    %59 = vector.shape_cast %58 : vector<1x16x128xf32> to vector<16x128xf32>
    %60 = vector.shape_cast %57 : vector<16x128xf32> to vector<1x16x128xf32>
    tpu.vector_store %arg8[%c0_54, %c0_55, %c0_56], %60 {strides = array<i32>} : memref<1x16x128xf32, #tpu.memory_space<vmem>>, vector<1x16x128xf32>,
    return
  }
  func.func @transform_0(%arg0: i32) -> (i32, i32, i32) {
    %c0_i32 = arith.constant 0 : i32
    %c0_i32_0 = arith.constant 0 : i32
    %c0_i32_1 = arith.constant 0 : i32
    return %arg0, %c0_i32, %c0_i32_0 : i32, i32, i32
  }
  func.func @transform_1(%arg0: i32) -> (i32, i32, i32) {
    %c0_i32 = arith.constant 0 : i32
    %c0_i32_0 = arith.constant 0 : i32
    %c0_i32_1 = arith.constant 0 : i32
    %c0_i32_2 = arith.constant 0 : i32
    return %c0_i32, %c0_i32_0, %c0_i32_1 : i32, i32, i32
  }
  func.func @transform_2(%arg0: i32) -> (i32, i32) {
    %c0_i32 = arith.constant 0 : i32
    %c0_i32_0 = arith.constant 0 : i32
    %c0_i32_1 = arith.constant 0 : i32
    return %c0_i32, %c0_i32_0 : i32, i32
  }
  func.func @transform_3(%arg0: i32) -> (i32, i32) {
    %c0_i32 = arith.constant 0 : i32
    %c0_i32_0 = arith.constant 0 : i32
    %c0_i32_1 = arith.constant 0 : i32
    return %c0_i32, %c0_i32_0 : i32, i32
  }
  func.func @transform_4(%arg0: i32) -> (i32, i32, i32) {
    %c0_i32 = arith.constant 0 : i32
    %c0_i32_0 = arith.constant 0 : i32
    %c0_i32_1 = arith.constant 0 : i32
    %c0_i32_2 = arith.constant 0 : i32
    return %c0_i32, %c0_i32_0, %c0_i32_1 : i32, i32, i32
  }
  func.func @transform_5(%arg0: i32) -> (i32, i32) {
    %c0_i32 = arith.constant 0 : i32
    %c0_i32_0 = arith.constant 0 : i32
    %c0_i32_1 = arith.constant 0 : i32
    return %c0_i32, %c0_i32_0 : i32, i32
  }
  func.func @transform_6(%arg0: i32) -> (i32, i32) {
    %c0_i32 = arith.constant 0 : i32
    %c0_i32_0 = arith.constant 0 : i32
    %c0_i32_1 = arith.constant 0 : i32
    return %c0_i32, %c0_i32_0 : i32, i32
  }
  func.func @transform_7(%arg0: i32) -> (i32, i32, i32) {
    %c0_i32 = arith.constant 0 : i32
    %c0_i32_0 = arith.constant 0 : i32
    %c0_i32_1 = arith.constant 0 : i32
    return %arg0, %c0_i32, %c0_i32_0 : i32, i32, i32
  }
}

</mosaic_0001>

<llo_original>
// kernel: double_conv_forward.1
$region0: #{double_conv_forward.1}
  #allocation0 [shape = 'u32[]', space=smem, size = 0x4, offset = 0x4, fixed_abs, tag = 'smem constant byte address 0x4 - core index']
  #allocation1 [shape = 'u32[72,128]{1,0:T(1,128)}', space=vmem, size = 0x9000, scoped, tag = 'internal scratch']
  #allocation2 [shape = 'bf16[40,64]{1,0:T(8,128)(2,1)}', space=vmem, size = 0x2800, scoped, tag = 'scratch operand']
  #allocation3 [shape = 'bf16[40,128]{1,0:T(8,128)(2,1)}', space=vmem, size = 0x2800, scoped, tag = 'scratch operand']
  %s0 = inlined_call_operand.vmem [shape: f32[2,16,64], index: 0, kind: input, shape index: {}]
  %s1 = inlined_call_operand.vmem [shape: bf16[3,64,128], index: 1, kind: input, shape index: {}]
  %s2 = inlined_call_operand.vmem [shape: f32[1,128], index: 2, kind: input, shape index: {}]
  %s3 = inlined_call_operand.vmem [shape: f32[1,128], index: 3, kind: input, shape index: {}]
  %s4 = inlined_call_operand.vmem [shape: bf16[3,128,128], index: 4, kind: input, shape index: {}]
  %s5 = inlined_call_operand.vmem [shape: f32[1,128], index: 5, kind: input, shape index: {}]
  %s6 = inlined_call_operand.vmem [shape: f32[1,128], index: 6, kind: input, shape index: {}]
  %s7 = inlined_call_operand.vmem [shape: f32[2,16,128], index: 7, kind: output, shape index: {}]
  %s8 = sld [smem:[#allocation0]]
  $region61: #{double_conv_forward.1} parent=0
    _
  %s10 = ssub.s32 1, %s8
  %s11 = scalar_select 0, %s10, %s8
  loop: start=0, step=1, limit=4
  $region2: #{double_conv_forward.1} parent=0 // loop_pre_header
    _
  $region3: #{double_conv_forward.1} parent=0 // loop_header
    %s13 = sphi 0, %s17
    %p14 = scmp.ge.s32.totalorder %s13, 4
    %s23 = sphi 0, %s25
    %s26 = sphi 0, %s23
    %s27 = sphi 0, %s26
    %s43 = sphi 0, %s27
    %s47 = sphi 0, %s47
    %s49 = sphi 0, %s47
    %s50 = sphi 0, %s49
    %s64 = sphi 0, %s50
    %s68 = sphi 0, %s68
    %s70 = sphi 0, %s68
    %s71 = sphi 0, %s70
    %s85 = sphi 0, %s71
    %s89 = sphi 0, %s89
    %s91 = sphi 0, %s89
    %s92 = sphi 0, %s91
    %s106 = sphi 0, %s92
    %s110 = sphi 0, %s110
    %s112 = sphi 0, %s110
    %s113 = sphi 0, %s112
    %s127 = sphi 0, %s113
    %s131 = sphi 0, %s131
    %s133 = sphi 0, %s131
    %s134 = sphi 0, %s133
    %s148 = sphi 0, %s134
    %s152 = sphi 0, %s152
    %s154 = sphi 0, %s152
    %s155 = sphi 0, %s154
    %s169 = sphi 0, %s155
    %s175 = sphi 0, %s177
    %s178 = sphi 0, %s175
    %s179 = sphi 0, %s178
    %s195 = sphi 0, %s179
  $region4: #{double_conv_forward.1} parent=0 // loop_header_branch
    %16 = sbr.rel (%p14) target = $region8
  $region5: #{double_conv_forward.1} parent=0 // loop_body
    %s18 = ssub.s32 %s13, 1
    %s19 = ssub.s32 %s13, 2
    %s20 = sadd.s32 %s13, 1
    %s21 = ssub.s32 %s13, %s20
    %p22 = scmp.eq.s32.totalorder %s21, 0
    %s24 = sadd.s32 %s23, 1
    %s25 = scalar_select %p22, %s23, %s24
    %p28 = pneg %p22
    %p29 = scmp.eq.s32.totalorder %s13, 1
    %p30 = por %p28, %p29
    %p31 = scmp.ne.s32.totalorder %s23, %s26
    %p32 = scmp.eq.s32.totalorder %s13, 0
    %p33 = por %p31, %p32
    %p34 = scmp.ne.s32.totalorder %s23, %s26
    %p35 = scmp.eq.s32.totalorder %s18, 1
    %p36 = por %p34, %p35
    %p37 = scmp.ne.s32.totalorder %s26, %s27
    %p38 = scmp.eq.s32.totalorder %s18, 0
    %p39 = por %p37, %p38
    %p40 = scmp.ne.s32.totalorder %s26, %s27
    %p41 = scmp.eq.s32.totalorder %s19, 1
    %p42 = por %p40, %p41
    %p44 = scmp.ne.s32.totalorder %s27, %s43
    %p45 = scmp.eq.s32.totalorder %s19, 0
    %p46 = por %p44, %p45
    %s48 = sadd.s32 %s47, 1
    %p51 = scmp.eq.s32.totalorder %s13, 1
    %p52 = scmp.ne.s32.totalorder %s47, %s49
    %p53 = scmp.eq.s32.totalorder %s13, 0
    %p54 = por %p52, %p53
    %p55 = scmp.ne.s32.totalorder %s47, %s49
    %p56 = scmp.eq.s32.totalorder %s18, 1
    %p57 = por %p55, %p56
    %p58 = scmp.ne.s32.totalorder %s49, %s50
    %p59 = scmp.eq.s32.totalorder %s18, 0
    %p60 = por %p58, %p59
    %p61 = scmp.ne.s32.totalorder %s49, %s50
    %p62 = scmp.eq.s32.totalorder %s19, 1
    %p63 = por %p61, %p62
    %p65 = scmp.ne.s32.totalorder %s50, %s64
    %p66 = scmp.eq.s32.totalorder %s19, 0
    %p67 = por %p65, %p66
    %s69 = sadd.s32 %s68, 1
    %p72 = scmp.eq.s32.totalorder %s13, 1
    %p73 = scmp.ne.s32.totalorder %s68, %s70
    %p74 = scmp.eq.s32.totalorder %s13, 0
    %p75 = por %p73, %p74
    %p76 = scmp.ne.s32.totalorder %s68, %s70
    %p77 = scmp.eq.s32.totalorder %s18, 1
    %p78 = por %p76, %p77
    %p79 = scmp.ne.s32.totalorder %s70, %s71
    %p80 = scmp.eq.s32.totalorder %s18, 0
    %p81 = por %p79, %p80
    %p82 = scmp.ne.s32.totalorder %s70, %s71
    %p83 = scmp.eq.s32.totalorder %s19, 1
    %p84 = por %p82, %p83
    %p86 = scmp.ne.s32.totalorder %s71, %s85
    %p87 = scmp.eq.s32.totalorder %s19, 0
    %p88 = por %p86, %p87
    %s90 = sadd.s32 %s89, 1
    %p93 = scmp.eq.s32.totalorder %s13, 1
    %p94 = scmp.ne.s32.totalorder %s89, %s91
    %p95 = scmp.eq.s32.totalorder %s13, 0
    %p96 = por %p94, %p95
    %p97 = scmp.ne.s32.totalorder %s89, %s91
    %p98 = scmp.eq.s32.totalorder %s18, 1
    %p99 = por %p97, %p98
    %p100 = scmp.ne.s32.totalorder %s91, %s92
    %p101 = scmp.eq.s32.totalorder %s18, 0
    %p102 = por %p100, %p101
    %p103 = scmp.ne.s32.totalorder %s91, %s92
    %p104 = scmp.eq.s32.totalorder %s19, 1
    %p105 = por %p103, %p104
    %p107 = scmp.ne.s32.totalorder %s92, %s106
    %p108 = scmp.eq.s32.totalorder %s19, 0
    %p109 = por %p107, %p108
    %s111 = sadd.s32 %s110, 1
    %p114 = scmp.eq.s32.totalorder %s13, 1
    %p115 = scmp.ne.s32.totalorder %s110, %s112
    %p116 = scmp.eq.s32.totalorder %s13, 0
    %p117 = por %p115, %p116
    %p118 = scmp.ne.s32.totalorder %s110, %s112
    %p119 = scmp.eq.s32.totalorder %s18, 1
    %p120 = por %p118, %p119
    %p121 = scmp.ne.s32.totalorder %s112, %s113
    %p122 = scmp.eq.s32.totalorder %s18, 0
    %p123 = por %p121, %p122
    %p124 = scmp.ne.s32.totalorder %s112, %s113
    %p125 = scmp.eq.s32.totalorder %s19, 1
    %p126 = por %p124, %p125
    %p128 = scmp.ne.s32.totalorder %s113, %s127
    %p129 = scmp.eq.s32.totalorder %s19, 0
    %p130 = por %p128, %p129
    %s132 = sadd.s32 %s131, 1
    %p135 = scmp.eq.s32.totalorder %s13, 1
    %p136 = scmp.ne.s32.totalorder %s131, %s133
    %p137 = scmp.eq.s32.totalorder %s13, 0
    %p138 = por %p136, %p137
    %p139 = scmp.ne.s32.totalorder %s131, %s133
    %p140 = scmp.eq.s32.totalorder %s18, 1
    %p141 = por %p139, %p140
    %p142 = scmp.ne.s32.totalorder %s133, %s134
    %p143 = scmp.eq.s32.totalorder %s18, 0
    %p144 = por %p142, %p143
    %p145 = scmp.ne.s32.totalorder %s133, %s134
    %p146 = scmp.eq.s32.totalorder %s19, 1
    %p147 = por %p145, %p146
    %p149 = scmp.ne.s32.totalorder %s134, %s148
    %p150 = scmp.eq.s32.totalorder %s19, 0
    %p151 = por %p149, %p150
    %s153 = sadd.s32 %s152, 1
    %p156 = scmp.eq.s32.totalorder %s13, 1
    %p157 = scmp.ne.s32.totalorder %s152, %s154
    %p158 = scmp.eq.s32.totalorder %s13, 0
    %p159 = por %p157, %p158
    %p160 = scmp.ne.s32.totalorder %s152, %s154
    %p161 = scmp.eq.s32.totalorder %s18, 1
    %p162 = por %p160, %p161
    %p163 = scmp.ne.s32.totalorder %s154, %s155
    %p164 = scmp.eq.s32.totalorder %s18, 0
    %p165 = por %p163, %p164
    %p166 = scmp.ne.s32.totalorder %s154, %s155
    %p167 = scmp.eq.s32.totalorder %s19, 1
    %p168 = por %p166, %p167
    %p170 = scmp.ne.s32.totalorder %s155, %s169
    %p171 = scmp.eq.s32.totalorder %s19, 0
    %p172 = por %p170, %p171
    %s173 = ssub.s32 %s13, %s20
    %p174 = scmp.eq.s32.totalorder %s173, 0
    %s176 = sadd.s32 %s175, 1
    %s177 = scalar_select %p174, %s175, %s176
    %p180 = pneg %p174
    %p181 = scmp.eq.s32.totalorder %s13, 1
    %p182 = por %p180, %p181
    %p183 = scmp.ne.s32.totalorder %s175, %s178
    %p184 = scmp.eq.s32.totalorder %s13, 0
    %p185 = por %p183, %p184
    %p186 = scmp.ne.s32.totalorder %s175, %s178
    %p187 = scmp.eq.s32.totalorder %s18, 1
    %p188 = por %p186, %p187
    %p189 = scmp.ne.s32.totalorder %s178, %s179
    %p190 = scmp.eq.s32.totalorder %s18, 0
    %p191 = por %p189, %p190
    %p192 = scmp.ne.s32.totalorder %s178, %s179
    %p193 = scmp.eq.s32.totalorder %s19, 1
    %p194 = por %p192, %p193
    %p196 = scmp.ne.s32.totalorder %s179, %s195
    %p197 = scmp.eq.s32.totalorder %s19, 0
    %p198 = por %p196, %p197
    %p199 = scmp.le.s32.totalorder 1, %s13
    %p200 = scmp.lt.s32.totalorder %s13, 3
    %p201 = pnand %p199, %p200
    %p202 = pneg %p201
    // Predicated region
    $region9: #{double_conv_forward.1} parent=5 // pred_check
      _
    $region10: #{double_conv_forward.1} parent=5 // pred_check_branch
      %204 = sbr.rel (%p201) target = $region12
    $region11: #{double_conv_forward.1} parent=5 // pred_region
      %s205 = ssub.s32 %s13, 1
      // Predicated region
      $region13: #{double_conv_forward.1} parent=11 // pred_check
        %p206 = pneg %p60
      $region14: #{double_conv_forward.1} parent=11 // pred_check_branch
        %208 = sbr.rel (%p206) target = $region16
      $region15: #{double_conv_forward.1} parent=11 // pred_region
        _
      $region16: #{double_conv_forward.1} parent=11 // pred_fallthru
        _
      // Predicated region
      $region17: #{double_conv_forward.1} parent=11 // pred_check
        %p209 = pneg %p81
      $region18: #{double_conv_forward.1} parent=11 // pred_check_branch
        %211 = sbr.rel (%p209) target = $region20
      $region19: #{double_conv_forward.1} parent=11 // pred_region
        _
      $region20: #{double_conv_forward.1} parent=11 // pred_fallthru
        _
      // Predicated region
      $region21: #{double_conv_forward.1} parent=11 // pred_check
        %p212 = pneg %p102
      $region22: #{double_conv_forward.1} parent=11 // pred_check_branch
        %214 = sbr.rel (%p212) target = $region24
      $region23: #{double_conv_forward.1} parent=11 // pred_region
        _
      $region24: #{double_conv_forward.1} parent=11 // pred_fallthru
        _
      // Predicated region
      $region25: #{double_conv_forward.1} parent=11 // pred_check
        %p215 = pneg %p123
      $region26: #{double_conv_forward.1} parent=11 // pred_check_branch
        %217 = sbr.rel (%p215) target = $region28
      $region27: #{double_conv_forward.1} parent=11 // pred_region
        _
      $region28: #{double_conv_forward.1} parent=11 // pred_fallthru
        _
      // Predicated region
      $region29: #{double_conv_forward.1} parent=11 // pred_check
        %p218 = pneg %p144
      $region30: #{double_conv_forward.1} parent=11 // pred_check_branch
        %220 = sbr.rel (%p218) target = $region32
      $region31: #{double_conv_forward.1} parent=11 // pred_region
        _
      $region32: #{double_conv_forward.1} parent=11 // pred_fallthru
        _
      // Predicated region
      $region33: #{double_conv_forward.1} parent=11 // pred_check
        %p221 = pneg %p165
      $region34: #{double_conv_forward.1} parent=11 // pred_check_branch
        %223 = sbr.rel (%p221) target = $region36
      $region35: #{double_conv_forward.1} parent=11 // pred_region
        _
      $region36: #{double_conv_forward.1} parent=11 // pred_fallthru
        _
    $region12: #{double_conv_forward.1} parent=5 // pred_fallthru
      _
    %p224 = scmp.lt.s32.totalorder %s13, 2
    // Predicated region
    $region37: #{double_conv_forward.1} parent=5 // pred_check
      %p225 = pneg %p224
    $region38: #{double_conv_forward.1} parent=5 // pred_check_branch
      %227 = sbr.rel (%p225) target = $region40
    $region39: #{double_conv_forward.1} parent=5 // pred_region
      // Predicated region
      $region41: #{double_conv_forward.1} parent=39 // pred_check
        %p228 = pneg %p33
      $region42: #{double_conv_forward.1} parent=39 // pred_check_branch
        %230 = sbr.rel (%p228) target = $region44
      $region43: #{double_conv_forward.1} parent=39 // pred_region
        %p231 = scmp.lt.s32.totalorder %s13, 1
        %s232 = scalar_select %p231, %s13, 1
        %s233 = smul.addr %s232, 2
        %s234 = smul.addr %s233, 8
        %s235 = scalar_lea.vmem %s0, %s234
      $region44: #{double_conv_forward.1} parent=39 // pred_fallthru
        _
    $region40: #{double_conv_forward.1} parent=5 // pred_fallthru
      _
    %p236 = scmp.le.s32.totalorder 1, %s13
    %p237 = scmp.lt.s32.totalorder %s13, 3
    %p238 = pnand %p236, %p237
    %p239 = pneg %p238
    // Predicated region
    $region45: #{double_conv_forward.1} parent=5 // pred_check
      _
    $region46: #{double_conv_forward.1} parent=5 // pred_check_branch
      %241 = sbr.rel (%p238) target = $region48
    $region47: #{double_conv_forward.1} parent=5 // pred_region
      %s242 = ssub.s32 %s13, 1
      %p243 = scmp.lt.s32.totalorder %s18, 1
      %s244 = scalar_select %p243, %s18, 1
      %s245 = smul.addr %s244, 2
      %s246 = smul.addr %s245, 8
      %s247 = scalar_lea.vmem %s0, %s246
      %p248 = pneg %p39
      %p249 = pneg %p36
      %p250 = pneg %p60
      %p251 = pneg %p57
      %p252 = pneg %p81
      %p253 = pneg %p78
      %p254 = pneg %p102
      %p255 = pneg %p99
      %p256 = pneg %p123
      %p257 = pneg %p120
      %p258 = pneg %p144
      %p259 = pneg %p141
      %p260 = pneg %p165
      %p261 = pneg %p162
      %p262 = pneg %p191
      %p263 = pneg %p188
      %p264 = scmp.lt.s32.totalorder %s18, 1
      %s265 = scalar_select %p264, %s18, 1
      %s266 = smul.addr %s265, 2
      %s267 = smul.addr %s266, 8
      %s268 = scalar_lea.vmem %s7, %s267
      %p269 = scmp.lt.s32.totalorder %s18, 1
      %s270 = scalar_select %p269, %s18, 1
      %s271 = smul.addr %s270, 2
      %s272 = smul.addr %s271, 8
      %s273 = scalar_lea.vmem %s0, %s272
      %p274 = scmp.lt.s32.totalorder %s18, 1
      %s275 = scalar_select %p274, %s18, 1
      %s276 = smul.addr %s275, 2
      %s277 = smul.addr %s276, 8
      %s278 = scalar_lea.vmem %s7, %s277
      %vm280 = vcmask 519168
      %281 = vst.msk [vmem:[#allocation2] sm:$0xf] %vm280, 0
      %282 = vst.msk [vmem:[#allocation2 + $0x4] sm:$0xf] %vm280, 0
      %283 = vst.msk [vmem:[#allocation2 + $0x8] sm:$0xf] %vm280, 0
      %284 = vst.msk [vmem:[#allocation2 + $0xc] sm:$0xf] %vm280, 0
      %285 = vst.msk [vmem:[#allocation2 + $0x10] sm:$0xf] %vm280, 0
      %v286 = vld [vmem:[%s273] sm:$0xff]
      %v287 = vld [vmem:[%s273 + $0x8] sm:$0xff]
      %v288 = vpack.c.bf16 %v286, %v286
      %v289 = vpack.c.bf16 %v287, %v287
      %290 = vst.msk [vmem:[#allocation2 + $0x8] sm:$0xf] %vm280, %v288
      %291 = vst.msk [vmem:[#allocation2 + $0xc] sm:$0xf] %vm280, %v289
      %v292 = vld [vmem:[#allocation2 + $0x4] sm:$0x8]
      %v293 = vld [vmem:[#allocation2 + $0x8] sm:$0xf]
      %v294 = vld [vmem:[#allocation2 + $0xc] sm:$0xf]
      %v295 = vld [vmem:[%s1] sm:$0xf]
      %v296 = vld [vmem:[%s1 + $0x4] sm:$0xf]
      %v297 = vld [vmem:[%s1 + $0x8] sm:$0xf]
      %v298 = vld [vmem:[%s1 + $0xc] sm:$0xf]
      %v299 = vld [vmem:[%s1 + $0x10] sm:$0xf]
      %v300 = vld [vmem:[%s1 + $0x14] sm:$0xf]
      %v301 = vld [vmem:[%s1 + $0x18] sm:$0xf]
      %v302 = vld [vmem:[%s1 + $0x1c] sm:$0xf]
      %s303 = scalar_lea.vmem %s1, 32
      %v304 = vld [vmem:[%s303] sm:$0xf]
      %v305 = vld [vmem:[%s303 + $0x4] sm:$0xf]
      %v306 = vld [vmem:[%s303 + $0x8] sm:$0xf]
      %v307 = vld [vmem:[%s303 + $0xc] sm:$0xf]
      %v308 = vld [vmem:[%s303 + $0x10] sm:$0xf]
      %v309 = vld [vmem:[%s303 + $0x14] sm:$0xf]
      %v310 = vld [vmem:[%s303 + $0x18] sm:$0xf]
      %v311 = vld [vmem:[%s303 + $0x1c] sm:$0xf]
      %v314 = vunpack.c.l.b16 %v293
      %v315 = vunpack.c.l.b16 %v294
      %v316 = vpack.c.b16 %v315, %v314
      %v325 = vunpack.c.l.b16 %v304
      %v326 = vunpack.c.l.b16 %v305
      %v327 = vunpack.c.l.b16 %v306
      %v328 = vunpack.c.l.b16 %v307
      %v329 = vunpack.c.l.b16 %v308
      %v330 = vunpack.c.l.b16 %v309
      %v331 = vunpack.c.l.b16 %v310
      %v332 = vunpack.c.l.b16 %v311
      %v333 = vpack.c.b16 %v326, %v325
      %v334 = vpack.c.b16 %v328, %v327
      %v335 = vpack.c.b16 %v330, %v329
      %v336 = vpack.c.b16 %v332, %v331
      %vm341 = vcmask 523264
      %v343 = vsel %vm341, %v316, 0
      %345 = vmatpush.bf16.msra.mxu0 0
      %346 = vmatpush.bf16.msra.mxu0 0
      %347 = vmatpush.bf16.msra.mxu0 0
      %348 = vmatpush.bf16.msra.mxu0 0
      %349 = vmatpush.bf16.msra.mxu0 %v336
      %350 = vmatpush.bf16.msra.mxu0 %v335
      %351 = vmatpush.bf16.msra.mxu0 %v334
      %352 = vmatpush.bf16.msra.mxu0 %v333
      %353 = vmatmul.bf16.gmra.mxu0 %v343
      %v354 = vpop.f32.mrf.mxu0
      %v355 = vadd.f32 0.0, %v354
      %v356 = vpop.f32.mrf.mxu0
      %v357 = vadd.f32 0.0, %v356
      %358 = vdwg.mxu0
      %v360 = vunpack.c.l.b16 %v292
      %v361 = vpack.c.b16 %v314, %v360
      %v362 = vpack.c.b16 %v315, %v315
      %vm363 = vsmask.f32 4352
      %v365 = vshrl.u32 %v361, 16
      %v367 = vrot.slane %v365, 3
      %v368 = vshll.u32 %v361, 16
      %v370 = vrot.slane %v368, 4
      %v371 = vor.u32 %v367, %v370
      %v373 = vshrl.u32 %v362, 16
      %v375 = vrot.slane %v373, 3
      %v376 = vshll.u32 %v362, 16
      %v378 = vrot.slane %v376, 4
      %v379 = vor.u32 %v375, %v378
      %v380 = vsel %vm363, %v371, %v379
      %v389 = vunpack.c.l.b16 %v295
      %v390 = vunpack.c.l.b16 %v296
      %v391 = vunpack.c.l.b16 %v297
      %v392 = vunpack.c.l.b16 %v298
      %v393 = vunpack.c.l.b16 %v299
      %v394 = vunpack.c.l.b16 %v300
      %v395 = vunpack.c.l.b16 %v301
      %v396 = vunpack.c.l.b16 %v302
      %v397 = vpack.c.b16 %v390, %v389
      %v398 = vpack.c.b16 %v392, %v391
      %v399 = vpack.c.b16 %v394, %v393
      %v400 = vpack.c.b16 %v396, %v395
      %v406 = vsel %vm341, %v380, 0
      %408 = vmatpush.bf16.msra.mxu0 0
      %409 = vmatpush.bf16.msra.mxu0 0
      %410 = vmatpush.bf16.msra.mxu0 0
      %411 = vmatpush.bf16.msra.mxu0 0
      %412 = vmatpush.bf16.msra.mxu0 %v400
      %413 = vmatpush.bf16.msra.mxu0 %v399
      %414 = vmatpush.bf16.msra.mxu0 %v398
      %415 = vmatpush.bf16.msra.mxu0 %v397
      %416 = vmatmul.bf16.gmra.mxu0 %v406
      %v417 = vpop.f32.mrf.mxu0
      %v418 = vadd.f32 %v355, %v417
      %v419 = vpop.f32.mrf.mxu0
      %v420 = vadd.f32 %v357, %v419
      %421 = vdwg.mxu0
      %v422 = vld [vmem:[#allocation2 + $0x8] sm:$0xf]
      %v423 = vld [vmem:[#allocation2 + $0xc] sm:$0xf]
      %v424 = vld [vmem:[#allocation2 + $0x10] sm:$0x1]
      %s425 = scalar_lea.vmem %s1, 64
      %v426 = vld [vmem:[%s425] sm:$0xf]
      %v427 = vld [vmem:[%s425 + $0x4] sm:$0xf]
      %v428 = vld [vmem:[%s425 + $0x8] sm:$0xf]
      %v429 = vld [vmem:[%s425 + $0xc] sm:$0xf]
      %v430 = vld [vmem:[%s425 + $0x10] sm:$0xf]
      %v431 = vld [vmem:[%s425 + $0x14] sm:$0xf]
      %v432 = vld [vmem:[%s425 + $0x18] sm:$0xf]
      %v433 = vld [vmem:[%s425 + $0x1c] sm:$0xf]
      %v437 = vunpack.c.l.b16 %v422
      %v438 = vunpack.c.l.b16 %v423
      %v439 = vunpack.c.l.b16 %v424
      %v440 = vpack.c.b16 %v438, %v437
      %v441 = vpack.c.b16 %v439, %v439
      %vm442 = vsmask.f32 7424
      %v444 = vshrl.u32 %v440, 16
      %v446 = vshll.u32 %v440, 16
      %v448 = vrot.slane %v446, 1
      %v449 = vor.u32 %v444, %v448
      %v451 = vshll.u32 %v441, 16
      %v453 = vrot.slane %v451, 1
      %v454 = vsel %vm442, %v449, %v453
      %v463 = vunpack.c.l.b16 %v426
      %v464 = vunpack.c.l.b16 %v427
      %v465 = vunpack.c.l.b16 %v428
      %v466 = vunpack.c.l.b16 %v429
      %v467 = vunpack.c.l.b16 %v430
      %v468 = vunpack.c.l.b16 %v431
      %v469 = vunpack.c.l.b16 %v432
      %v470 = vunpack.c.l.b16 %v433
      %v471 = vpack.c.b16 %v464, %v463
      %v472 = vpack.c.b16 %v466, %v465
      %v473 = vpack.c.b16 %v468, %v467
      %v474 = vpack.c.b16 %v470, %v469
      %v480 = vsel %vm341, %v454, 0
      %482 = vmatpush.bf16.msra.mxu0 0
      %483 = vmatpush.bf16.msra.mxu0 0
      %484 = vmatpush.bf16.msra.mxu0 0
      %485 = vmatpush.bf16.msra.mxu0 0
      %486 = vmatpush.bf16.msra.mxu0 %v474
      %487 = vmatpush.bf16.msra.mxu0 %v473
      %488 = vmatpush.bf16.msra.mxu0 %v472
      %489 = vmatpush.bf16.msra.mxu0 %v471
      %490 = vmatmul.bf16.gmra.mxu0 %v480
      %v491 = vpop.f32.mrf.mxu0
      %v492 = vadd.f32 0.0, %v491
      %v493 = vpop.f32.mrf.mxu0
      %v494 = vadd.f32 0.0, %v493
      %495 = vdwg.mxu0
      %v496 = vadd.f32 %v418, %v492
      %v497 = vadd.f32 %v420, %v494
      %v498 = vld [vmem:[%s2] sm:$0x1]
      %v500 = vperm.slane %v498, 0
      %v502 = vmul.f32 %v496, %v500
      %v503 = vmul.f32 %v497, %v500
      %v504 = vld [vmem:[%s3] sm:$0x1]
      %v506 = vperm.slane %v504, 0
      %v508 = vadd.f32 %v502, %v506
      %v509 = vadd.f32 %v503, %v506
      %v510 = vmax.f32 %v508, 0.0
      %v511 = vmax.f32 %v509, 0.0
      %512 = vst [vmem:[#allocation3] sm:$0xf] 0
      %513 = vst [vmem:[#allocation3 + $0x4] sm:$0xf] 0
      %514 = vst [vmem:[#allocation3 + $0x8] sm:$0xf] 0
      %515 = vst [vmem:[#allocation3 + $0xc] sm:$0xf] 0
      %516 = vst [vmem:[#allocation3 + $0x10] sm:$0xf] 0
      %v517 = vpack.c.bf16 %v510, %v510
      %v518 = vpack.c.bf16 %v511, %v511
      %519 = vst [vmem:[#allocation3 + $0x8] sm:$0xf] %v517
      %520 = vst [vmem:[#allocation3 + $0xc] sm:$0xf] %v518
      %v521 = vld [vmem:[#allocation3 + $0x4] sm:$0x8]
      %v522 = vld [vmem:[#allocation3 + $0x8] sm:$0xf]
      %v523 = vld [vmem:[#allocation3 + $0xc] sm:$0xf]
      %v524 = vld [vmem:[%s4] sm:$0xf]
      %v525 = vld [vmem:[%s4 + $0x4] sm:$0xf]
      %v526 = vld [vmem:[%s4 + $0x8] sm:$0xf]
      %v527 = vld [vmem:[%s4 + $0xc] sm:$0xf]
      %v528 = vld [vmem:[%s4 + $0x10] sm:$0xf]
      %v529 = vld [vmem:[%s4 + $0x14] sm:$0xf]
      %v530 = vld [vmem:[%s4 + $0x18] sm:$0xf]
      %v531 = vld [vmem:[%s4 + $0x1c] sm:$0xf]
      %v532 = vld [vmem:[%s4 + $0x20] sm:$0xf]
      %v533 = vld [vmem:[%s4 + $0x24] sm:$0xf]
      %v534 = vld [vmem:[%s4 + $0x28] sm:$0xf]
      %v535 = vld [vmem:[%s4 + $0x2c] sm:$0xf]
      %v536 = vld [vmem:[%s4 + $0x30] sm:$0xf]
      %v537 = vld [vmem:[%s4 + $0x34] sm:$0xf]
      %v538 = vld [vmem:[%s4 + $0x38] sm:$0xf]
      %v539 = vld [vmem:[%s4 + $0x3c] sm:$0xf]
      %s540 = scalar_lea.vmem %s4, 64
      %v541 = vld [vmem:[%s540] sm:$0xf]
      %v542 = vld [vmem:[%s540 + $0x4] sm:$0xf]
      %v543 = vld [vmem:[%s540 + $0x8] sm:$0xf]
      %v544 = vld [vmem:[%s540 + $0xc] sm:$0xf]
      %v545 = vld [vmem:[%s540 + $0x10] sm:$0xf]
      %v546 = vld [vmem:[%s540 + $0x14] sm:$0xf]
      %v547 = vld [vmem:[%s540 + $0x18] sm:$0xf]
      %v548 = vld [vmem:[%s540 + $0x1c] sm:$0xf]
      %v549 = vld [vmem:[%s540 + $0x20] sm:$0xf]
      %v550 = vld [vmem:[%s540 + $0x24] sm:$0xf]
      %v551 = vld [vmem:[%s540 + $0x28] sm:$0xf]
      %v552 = vld [vmem:[%s540 + $0x2c] sm:$0xf]
      %v553 = vld [vmem:[%s540 + $0x30] sm:$0xf]
      %v554 = vld [vmem:[%s540 + $0x34] sm:$0xf]
      %v555 = vld [vmem:[%s540 + $0x38] sm:$0xf]
      %v556 = vld [vmem:[%s540 + $0x3c] sm:$0xf]
      %v559 = vunpack.c.l.b16 %v522
      %v560 = vunpack.c.l.b16 %v523
      %v561 = vpack.c.b16 %v560, %v559
      %v579 = vunpack.c.l.b16 %v541
      %v580 = vunpack.c.l.b16 %v542
      %v581 = vunpack.c.l.b16 %v543
      %v582 = vunpack.c.l.b16 %v544
      %v583 = vunpack.c.l.b16 %v545
      %v584 = vunpack.c.l.b16 %v546
      %v585 = vunpack.c.l.b16 %v547
      %v586 = vunpack.c.l.b16 %v548
      %v587 = vunpack.c.l.b16 %v549
      %v588 = vunpack.c.l.b16 %v550
      %v589 = vunpack.c.l.b16 %v551
      %v590 = vunpack.c.l.b16 %v552
      %v591 = vunpack.c.l.b16 %v553
      %v592 = vunpack.c.l.b16 %v554
      %v593 = vunpack.c.l.b16 %v555
      %v594 = vunpack.c.l.b16 %v556
      %v595 = vpack.c.b16 %v580, %v579
      %v596 = vpack.c.b16 %v582, %v581
      %v597 = vpack.c.b16 %v584, %v583
      %v598 = vpack.c.b16 %v586, %v585
      %v599 = vpack.c.b16 %v588, %v587
      %v600 = vpack.c.b16 %v590, %v589
      %v601 = vpack.c.b16 %v592, %v591
      %v602 = vpack.c.b16 %v594, %v593
      %611 = vmatpush.bf16.msra.mxu0 %v602
      %612 = vmatpush.bf16.msra.mxu0 %v601
      %613 = vmatpush.bf16.msra.mxu0 %v600
      %614 = vmatpush.bf16.msra.mxu0 %v599
      %615 = vmatpush.bf16.msra.mxu0 %v598
      %616 = vmatpush.bf16.msra.mxu0 %v597
      %617 = vmatpush.bf16.msra.mxu0 %v596
      %618 = vmatpush.bf16.msra.mxu0 %v595
      %619 = vmatmul.bf16.gmra.mxu0 %v561
      %v620 = vpop.f32.mrf.mxu0
      %v621 = vadd.f32 0.0, %v620
      %v622 = vpop.f32.mrf.mxu0
      %v623 = vadd.f32 0.0, %v622
      %624 = vdwg.mxu0
      %v626 = vunpack.c.l.b16 %v521
      %v627 = vpack.c.b16 %v559, %v626
      %v628 = vpack.c.b16 %v560, %v560
      %v630 = vshrl.u32 %v627, 16
      %v632 = vrot.slane %v630, 3
      %v633 = vshll.u32 %v627, 16
      %v635 = vrot.slane %v633, 4
      %v636 = vor.u32 %v632, %v635
      %v638 = vshrl.u32 %v628, 16
      %v640 = vrot.slane %v638, 3
      %v641 = vshll.u32 %v628, 16
      %v643 = vrot.slane %v641, 4
      %v644 = vor.u32 %v640, %v643
      %v645 = vsel %vm363, %v636, %v644
      %v663 = vunpack.c.l.b16 %v524
      %v664 = vunpack.c.l.b16 %v525
      %v665 = vunpack.c.l.b16 %v526
      %v666 = vunpack.c.l.b16 %v527
      %v667 = vunpack.c.l.b16 %v528
      %v668 = vunpack.c.l.b16 %v529
      %v669 = vunpack.c.l.b16 %v530
      %v670 = vunpack.c.l.b16 %v531
      %v671 = vunpack.c.l.b16 %v532
      %v672 = vunpack.c.l.b16 %v533
      %v673 = vunpack.c.l.b16 %v534
      %v674 = vunpack.c.l.b16 %v535
      %v675 = vunpack.c.l.b16 %v536
      %v676 = vunpack.c.l.b16 %v537
      %v677 = vunpack.c.l.b16 %v538
      %v678 = vunpack.c.l.b16 %v539
      %v679 = vpack.c.b16 %v664, %v663
      %v680 = vpack.c.b16 %v666, %v665
      %v681 = vpack.c.b16 %v668, %v667
      %v682 = vpack.c.b16 %v670, %v669
      %v683 = vpack.c.b16 %v672, %v671
      %v684 = vpack.c.b16 %v674, %v673
      %v685 = vpack.c.b16 %v676, %v675
      %v686 = vpack.c.b16 %v678, %v677
      %695 = vmatpush.bf16.msra.mxu0 %v686
      %696 = vmatpush.bf16.msra.mxu0 %v685
      %697 = vmatpush.bf16.msra.mxu0 %v684
      %698 = vmatpush.bf16.msra.mxu0 %v683
      %699 = vmatpush.bf16.msra.mxu0 %v682
      %700 = vmatpush.bf16.msra.mxu0 %v681
      %701 = vmatpush.bf16.msra.mxu0 %v680
      %702 = vmatpush.bf16.msra.mxu0 %v679
      %703 = vmatmul.bf16.gmra.mxu0 %v645
      %v704 = vpop.f32.mrf.mxu0
      %v705 = vadd.f32 %v621, %v704
      %v706 = vpop.f32.mrf.mxu0
      %v707 = vadd.f32 %v623, %v706
      %708 = vdwg.mxu0
      %v709 = vld [vmem:[#allocation3 + $0x8] sm:$0xf]
      %v710 = vld [vmem:[#allocation3 + $0xc] sm:$0xf]
      %v711 = vld [vmem:[#allocation3 + $0x10] sm:$0x1]
      %s712 = scalar_lea.vmem %s4, 128
      %v713 = vld [vmem:[%s712] sm:$0xf]
      %v714 = vld [vmem:[%s712 + $0x4] sm:$0xf]
      %v715 = vld [vmem:[%s712 + $0x8] sm:$0xf]
      %v716 = vld [vmem:[%s712 + $0xc] sm:$0xf]
      %v717 = vld [vmem:[%s712 + $0x10] sm:$0xf]
      %v718 = vld [vmem:[%s712 + $0x14] sm:$0xf]
      %v719 = vld [vmem:[%s712 + $0x18] sm:$0xf]
      %v720 = vld [vmem:[%s712 + $0x1c] sm:$0xf]
      %v721 = vld [vmem:[%s712 + $0x20] sm:$0xf]
      %v722 = vld [vmem:[%s712 + $0x24] sm:$0xf]
      %v723 = vld [vmem:[%s712 + $0x28] sm:$0xf]
      %v724 = vld [vmem:[%s712 + $0x2c] sm:$0xf]
      %v725 = vld [vmem:[%s712 + $0x30] sm:$0xf]
      %v726 = vld [vmem:[%s712 + $0x34] sm:$0xf]
      %v727 = vld [vmem:[%s712 + $0x38] sm:$0xf]
      %v728 = vld [vmem:[%s712 + $0x3c] sm:$0xf]
      %v732 = vunpack.c.l.b16 %v709
      %v733 = vunpack.c.l.b16 %v710
      %v734 = vunpack.c.l.b16 %v711
      %v735 = vpack.c.b16 %v733, %v732
      %v736 = vpack.c.b16 %v734, %v734
      %v738 = vshrl.u32 %v735, 16
      %v740 = vshll.u32 %v735, 16
      %v742 = vrot.slane %v740, 1
      %v743 = vor.u32 %v738, %v742
      %v745 = vshll.u32 %v736, 16
      %v747 = vrot.slane %v745, 1
      %v748 = vsel %vm442, %v743, %v747
      %v766 = vunpack.c.l.b16 %v713
      %v767 = vunpack.c.l.b16 %v714
      %v768 = vunpack.c.l.b16 %v715
      %v769 = vunpack.c.l.b16 %v716
      %v770 = vunpack.c.l.b16 %v717
      %v771 = vunpack.c.l.b16 %v718
      %v772 = vunpack.c.l.b16 %v719
      %v773 = vunpack.c.l.b16 %v720
      %v774 = vunpack.c.l.b16 %v721
      %v775 = vunpack.c.l.b16 %v722
      %v776 = vunpack.c.l.b16 %v723
      %v777 = vunpack.c.l.b16 %v724
      %v778 = vunpack.c.l.b16 %v725
      %v779 = vunpack.c.l.b16 %v726
      %v780 = vunpack.c.l.b16 %v727
      %v781 = vunpack.c.l.b16 %v728
      %v782 = vpack.c.b16 %v767, %v766
      %v783 = vpack.c.b16 %v769, %v768
      %v784 = vpack.c.b16 %v771, %v770
      %v785 = vpack.c.b16 %v773, %v772
      %v786 = vpack.c.b16 %v775, %v774
      %v787 = vpack.c.b16 %v777, %v776
      %v788 = vpack.c.b16 %v779, %v778
      %v789 = vpack.c.b16 %v781, %v780
      %798 = vmatpush.bf16.msra.mxu0 %v789
      %799 = vmatpush.bf16.msra.mxu0 %v788
      %800 = vmatpush.bf16.msra.mxu0 %v787
      %801 = vmatpush.bf16.msra.mxu0 %v786
      %802 = vmatpush.bf16.msra.mxu0 %v785
      %803 = vmatpush.bf16.msra.mxu0 %v784
      %804 = vmatpush.bf16.msra.mxu0 %v783
      %805 = vmatpush.bf16.msra.mxu0 %v782
      %806 = vmatmul.bf16.gmra.mxu0 %v748
      %v807 = vpop.f32.mrf.mxu0
      %v808 = vadd.f32 0.0, %v807
      %v809 = vpop.f32.mrf.mxu0
      %v810 = vadd.f32 0.0, %v809
      %811 = vdwg.mxu0
      %v812 = vadd.f32 %v705, %v808
      %v813 = vadd.f32 %v707, %v810
      %v814 = vld [vmem:[%s5] sm:$0x1]
      %v816 = vperm.slane %v814, 0
      %v818 = vmul.f32 %v812, %v816
      %v819 = vmul.f32 %v813, %v816
      %v820 = vld [vmem:[%s6] sm:$0x1]
      %v822 = vperm.slane %v820, 0
      %v824 = vadd.f32 %v818, %v822
      %v825 = vadd.f32 %v819, %v822
      %v826 = vmax.f32 %v824, 0.0
      %v827 = vmax.f32 %v825, 0.0
      %828 = vst [vmem:[%s278] sm:$0xff] %v826
      %829 = vst [vmem:[%s278 + $0x8] sm:$0xff] %v827
      %p830 = scmp.lt.s32.totalorder %s18, 1
      %s831 = scalar_select %p830, %s18, 1
      %s832 = smul.addr %s831, 2
      %s833 = smul.addr %s832, 8
      %s834 = scalar_lea.vmem %s7, %s833
      // Predicated region
      $region49: #{double_conv_forward.1} parent=47 // pred_check
        %p835 = pneg %p188
      $region50: #{double_conv_forward.1} parent=47 // pred_check_branch
        %837 = sbr.rel (%p835) target = $region52
      $region51: #{double_conv_forward.1} parent=47 // pred_region
        _
      $region52: #{double_conv_forward.1} parent=47 // pred_fallthru
        _
    $region48: #{double_conv_forward.1} parent=5 // pred_fallthru
      _
    %p838 = scmp.le.s32.totalorder 2, %s13
    // Predicated region
    $region53: #{double_conv_forward.1} parent=5 // pred_check
      %p839 = pneg %p838
    $region54: #{double_conv_forward.1} parent=5 // pred_check_branch
      %841 = sbr.rel (%p839) target = $region56
    $region55: #{double_conv_forward.1} parent=5 // pred_region
      %s842 = ssub.s32 %s13, 2
      // Predicated region
      $region57: #{double_conv_forward.1} parent=55 // pred_check
        %p843 = pneg %p194
      $region58: #{double_conv_forward.1} parent=55 // pred_check_branch
        %845 = sbr.rel (%p843) target = $region60
      $region59: #{double_conv_forward.1} parent=55 // pred_region
        %p846 = scmp.lt.s32.totalorder %s19, 1
        %s847 = scalar_select %p846, %s19, 1
        %s848 = smul.addr %s847, 2
        %s849 = smul.addr %s848, 8
        %s850 = scalar_lea.vmem %s7, %s849
      $region60: #{double_conv_forward.1} parent=55 // pred_fallthru
        _
    $region56: #{double_conv_forward.1} parent=5 // pred_fallthru
      _
  $region6: #{double_conv_forward.1} parent=0 // loop_footer
    %s17 = sadd.s32 1, %s13
  $region7: #{double_conv_forward.1} parent=0 // loop_footer_branch
    %12 = sbr.rel target = $region3
  $region8: #{double_conv_forward.1} parent=0 // loop_exit
    _

</llo_original>
